<compile_context>
chip_gen: v7x
topology: tpu7x:2x2x1
jax: 0.10.0
libtpu: 0.0.40
codegen_flags: <defaults>
</compile_context>

<pallas_src>
import jax
import jax.numpy as jnp
from jax.experimental import pallas as pl
from jax.experimental.pallas import tpu as pltpu

_LANE = 128      # vreg lane width     (granule for the last block dim)
_SUBLANE = 8     # vreg sublane count  (granule for the second-to-last dim)


def _add_pe_kernel(x_ref, pe_ref, o_ref):
    # x_ref/o_ref: (block_b, block_n); pe_ref: (1, block_n) broadcast over rows.
    o_ref[...] = x_ref[...] + pe_ref[...].astype(x_ref.dtype)


def _pick_block(dim, granule, cap):
    """Largest b such that: b divides dim, b % granule == 0, b <= cap.
    Falls back to the full dim (always a legal block extent) if none exists."""
    if dim <= cap:
        return dim
    b = (cap // granule) * granule
    while b >= granule:
        if dim % b == 0:
            return b
        b -= granule
    return dim


def learned_positional_encoding(x, position_embeddings, *,
                                donate_x=False,
                                target_block_bytes=2 * 1024 * 1024):
    """x: (B, S, D); position_embeddings: (1, S, D) (or (S, D)).
    Returns x + position_embeddings with output dtype == x.dtype."""
    B, S, D = x.shape
    assert position_embeddings.shape[-2:] == (S, D), (
        position_embeddings.shape, (S, D))

    N = S * D
    x2d = x.reshape(B, N)                     # free reshape (trailing-dim collapse)
    pe2d = position_embeddings.reshape(1, N)

    itemsize = jnp.dtype(x.dtype).itemsize
    # Lane-dense column tile: large multiple of 128 that divides N (or all of N).
    max_n = max(_LANE, target_block_bytes // (_SUBLANE * itemsize))
    block_n = _pick_block(N, _LANE, min(N, max_n))
    # Row tile sized so one x block is ~target_block_bytes (multiple of 8 or full B).
    max_b = max(1, target_block_bytes // (block_n * itemsize))
    block_b = _pick_block(B, _SUBLANE, min(B, max_b))

    # Columns on the outer axis, rows inner -> pe block invariant over inner loop.
    grid = (N // block_n, B // block_b)

    out2d = pl.pallas_call(
        _add_pe_kernel,
        out_shape=jax.ShapeDtypeStruct((B, N), x.dtype),
        grid=grid,
        in_specs=[
            pl.BlockSpec((block_b, block_n), lambda j, i: (i, j)),
            # pe: one lane-dense strip per column tile, broadcast over rows
            # inside the kernel; not re-fetched while only the row index moves.
            pl.BlockSpec((1, block_n), lambda j, i: (0, j)),
        ],
        out_specs=pl.BlockSpec((block_b, block_n), lambda j, i: (i, j)),
        compiler_params=pltpu.CompilerParams(
            dimension_semantics=("parallel", "parallel")),
        input_output_aliases=({0: 0} if donate_x else {}),
    )(x2d, pe2d)

    return out2d.reshape(B, S, D)


if __name__ == "__main__":
    key = jax.random.PRNGKey(0)
    kx, kp, kx2, kp2 = jax.random.split(key, 4)

    # Shapes consistent with the module: batch=2, seq_length=8, embedding_dim=32.
    B, S, D = 2, 8, 32
    x = jax.random.normal(kx, (B, S, D), dtype=jnp.float32)
    # nn.Parameter(torch.zeros(1, seq_length, embedding_dim)) — same shape,
    # filled with random values so the add is non-trivial.
    position_embeddings = jax.random.normal(kp, (1, S, D), dtype=jnp.float32)

    out = learned_positional_encoding(x, position_embeddings)
    out = jax.block_until_ready(out)
    ref = x + position_embeddings
    assert out.shape == (B, S, D)
    assert jnp.allclose(out, ref, atol=1e-6), "mismatch vs reference (small)"

    # Second run: small target block forces a multi-tile (cols x rows) grid to
    # exercise the tiled lane-dense path (grid = (4, 2); data is only 512 KiB).
    B2, S2, D2 = 16, 64, 128
    x2 = jax.random.normal(kx2, (B2, S2, D2), dtype=jnp.float32)
    pe2 = jax.random.normal(kp2, (1, S2, D2), dtype=jnp.float32)
    out2 = learned_positional_encoding(x2, pe2, target_block_bytes=64 * 1024)
    out2 = jax.block_until_ready(out2)
    assert jnp.allclose(out2, x2 + pe2, atol=1e-6), "mismatch vs reference (tiled)"

    # Third run: donated-input path (in-place aliasing of x's HBM buffer).
    x3 = jax.random.normal(kx, (B2, S2, D2), dtype=jnp.float32)
    out3 = learned_positional_encoding(x3, pe2, donate_x=True)
    out3 = jax.block_until_ready(out3)
    assert jnp.allclose(out3, x3 + pe2, atol=1e-6), "mismatch vs reference (aliased)"

    print("KERNEL_OK")
</pallas_src>

<mosaic_0001>
module attributes {stable_mosaic.version = 11 : i64} {
  func.func @_add_pe_kernel(%arg0: i32, %arg1: i32, %arg2: memref<2x256xf32, #tpu.memory_space<vmem>>, %arg3: memref<1x256xf32, #tpu.memory_space<vmem>>, %arg4: memref<2x256xf32, #tpu.memory_space<vmem>>) attributes {dimension_semantics = [#tpu.dimension_semantics<parallel>, #tpu.dimension_semantics<parallel>], iteration_bounds = array<i64: 1, 1>, scalar_prefetch = 0 : i64, scratch_operands = 0 : i64, tpu.core_type = #tpu.core_type<tc>, window_params = [{transform_indices = @transform_0, window_bounds = array<i64: 2, 256>}, {transform_indices = @transform_1, window_bounds = array<i64: 1, 256>}, {transform_indices = @transform_2, window_bounds = array<i64: 2, 256>}]} {
    %c0 = arith.constant 0 : index
    %c0_0 = arith.constant 0 : index
    %0 = vector.load %arg2[%c0, %c0_0] : memref<2x256xf32, #tpu.memory_space<vmem>>, vector<2x256xf32>
    %c0_1 = arith.constant 0 : index
    %c0_2 = arith.constant 0 : index
    %1 = vector.load %arg3[%c0_1, %c0_2] : memref<1x256xf32, #tpu.memory_space<vmem>>, vector<1x256xf32>
    %2 = vector.broadcast %1 : vector<1x256xf32> to vector<2x256xf32>
    %3 = arith.addf %0, %2 : vector<2x256xf32>
    %c0_3 = arith.constant 0 : index
    %c0_4 = arith.constant 0 : index
    %4 = vector.load %arg4[%c0_3, %c0_4] : memref<2x256xf32, #tpu.memory_space<vmem>>, vector<2x256xf32>
    tpu.vector_store %arg4[%c0_3, %c0_4], %3 {strides = array<i32>} : memref<2x256xf32, #tpu.memory_space<vmem>>, vector<2x256xf32>,
    return
  }
  func.func @transform_0(%arg0: i32, %arg1: i32) -> (i32, i32) {
    %c0_i32 = arith.constant 0 : i32
    return %arg1, %arg0 : i32, i32
  }
  func.func @transform_1(%arg0: i32, %arg1: i32) -> (i32, i32) {
    %c0_i32 = arith.constant 0 : i32
    %c0_i32_0 = arith.constant 0 : i32
    return %c0_i32, %arg0 : i32, i32
  }
  func.func @transform_2(%arg0: i32, %arg1: i32) -> (i32, i32) {
    %c0_i32 = arith.constant 0 : i32
    return %arg1, %arg0 : i32, i32
  }
}

</mosaic_0001>

<llo_original>
// kernel: tpu_custom_call.1
$region0: #{tpu_custom_call.1}
  #allocation0 [shape = 'u32[]', space=smem, size = 0x4, offset = 0x4, fixed_abs, tag = 'smem constant byte address 0x4 - core index']
  #allocation1 [shape = 'u32[144,128]{1,0:T(1,128)}', space=vmem, size = 0x12000, scoped, tag = 'internal scratch']
  %s0 = inlined_call_operand.hbm [shape: f32[2,256], index: 0, kind: input, shape index: {}]
  %s1 = inlined_call_operand.vmem [shape: f32[1,256], index: 1, kind: input, shape index: {}]
  %s2 = inlined_call_operand.hbm [shape: f32[2,256], index: 2, kind: output, shape index: {}]
  %s3 = sld [smem:[#allocation0]]
  $region22: #{tpu_custom_call.1} parent=0
    _
  %s5 = ssub.s32 1, %s3
  %s6 = scalar_select 0, %s5, %s3
  $region1: #{tpu_custom_call.1} parent=0
    #allocation2 [shape = 'u8[2048]{0}', space=vmem, size = 0x800, scoped, tag = 'input window, operand 0, single buffered']
    #allocation3 [shape = 's32[1]{0}', space=sflag, size = 0x4, scoped, tag = 'scoped memory for tpu_custom_call.1']
    #allocation4 [shape = 's32[1]{0}', space=sflag, size = 0x4, scoped, tag = 'scoped memory for tpu_custom_call.1']
    #allocation5 [shape = 'u8[2048]{0}', space=vmem, size = 0x800, scoped, tag = 'output window, operand 0, single buffered']
    %7 = vsyncpa [#allocation3], 0
    %8 = vsyncpa [#allocation4], 0
    // Predicated region
    $region2: #{tpu_custom_call.1} parent=1 // pred_check
      _
    $region3: #{tpu_custom_call.1} parent=1 // pred_check_branch
      %10 = sbr.rel (0) target = $region5
    $region4: #{tpu_custom_call.1} parent=1 // pred_region
      %s12 = ssub.s32 64, 64
      %13 = vsyncadd [#allocation3], %s12
      %s15 = sshll.u32 [#allocation2], 4
      %s16 = int_to_ptr.vmem [resolvable:$true] %s15
      %18 = dma.hbm_to_vmem [thread:$0]  %s0, 64, %s16, [#allocation3]
    $region5: #{tpu_custom_call.1} parent=1 // pred_fallthru
      _
    // Predicated region
    $region6: #{tpu_custom_call.1} parent=1 // pred_check
      _
    $region7: #{tpu_custom_call.1} parent=1 // pred_check_branch
      %20 = sbr.rel (0) target = $region9
    $region8: #{tpu_custom_call.1} parent=1 // pred_region
      _
    $region9: #{tpu_custom_call.1} parent=1 // pred_fallthru
      _
    // Predicated region
    $region10: #{tpu_custom_call.1} parent=1 // pred_check
      _
    $region11: #{tpu_custom_call.1} parent=1 // pred_check_branch
      %22 = sbr.rel (0) target = $region13
    $region12: #{tpu_custom_call.1} parent=1 // pred_region
      %23 = dma.done [#allocation3], 64
    $region13: #{tpu_custom_call.1} parent=1 // pred_fallthru
      _
    %v24 = vld [vmem:[#allocation2] sm:$0xf]
    %v25 = vld [vmem:[%s1] sm:$0x3]
    %v27 = vlaneseq
    %v28 = vshrl.u32 %v27, 7
    %v29 = vsub.s32 0, %v28
    %v30 = vrot.slane %v25, %v29
    %v31 = vlaneseq
    %v32 = vshrl.u32 %v31, 7
    %v33 = vsub.s32 1, %v32
    %v34 = vrot.slane %v25, %v33
    %v35 = vcombine.low %v30, %v34
    %v37 = vunpack.c.l.s4 1983009808
    %v38 = vunpack.c.0.s8 %v37
    %v39 = vlaneseq
    %v40 = vshrl.u32 %v39, 7
    %v41 = vsub.s32 %v38, %v40
    %v42 = vrot.slane %v35, %v41
    %v44 = vadd.f32 %v24, %v42
    %45 = vst [vmem:[#allocation5] sm:$0xf] %v44
    // Predicated region
    $region14: #{tpu_custom_call.1} parent=1 // pred_check
      _
    $region15: #{tpu_custom_call.1} parent=1 // pred_check_branch
      %47 = sbr.rel (0) target = $region17
    $region16: #{tpu_custom_call.1} parent=1 // pred_region
      %s49 = ssub.s32 64, 64
      %50 = vsyncadd [#allocation4], %s49
      %s52 = sshll.u32 [#allocation5], 4
      %s53 = int_to_ptr.vmem [resolvable:$true] %s52
      %55 = dma.vmem_to_hbm [thread:$0]  %s53, 64, %s2, [#allocation4]
    $region17: #{tpu_custom_call.1} parent=1 // pred_fallthru
      _
    // Predicated region
    $region18: #{tpu_custom_call.1} parent=1 // pred_check
      _
    $region19: #{tpu_custom_call.1} parent=1 // pred_check_branch
      %57 = sbr.rel (0) target = $region21
    $region20: #{tpu_custom_call.1} parent=1 // pred_region
      %58 = dma.done [#allocation4], 64
    $region21: #{tpu_custom_call.1} parent=1 // pred_fallthru
      _
    %59 = vsyncpa [#allocation3], 1
    %60 = vsyncpa [#allocation4], 1

</llo_original>
